<compile_context>
chip_gen: v6e
topology: v6e:2x2x1
jax: 0.10.0
libtpu: 0.0.40
codegen_flags: <defaults>
</compile_context>

<pallas_src>
import functools

import jax
import jax.numpy as jnp
from jax.experimental import pallas as pl
from jax.experimental.pallas import tpu as pltpu


IN_FEATURES = 42
OUT_FEATURES = 7

# Batch tile rows. With 42->128 / 7->128 lane padding, each (tb, feat) f32
# buffer is tb*128*4 bytes: 512 KiB at tb=1024; double-buffered x + out plus
# resident W/b is ~2.1 MiB total.
TB_MAX = 1024

# Below this batch size, plain XLA beats the custom-call fixed overhead.
SMALL_B_THRESHOLD = 4096


def _round_up(n, m):
    return ((n + m - 1) // m) * m


def _linear_kernel(x_ref, w_ref, b_ref, o_ref, *, mxu_dtype):
    # nn.Dropout(p=0.5): identity in eval mode -> no-op.
    x = x_ref[...].astype(mxu_dtype)
    w = w_ref[...].astype(mxu_dtype)
    out = jnp.dot(x, w, preferred_element_type=jnp.float32)
    o_ref[...] = (out + b_ref[...]).astype(o_ref.dtype)


def neural_network_forward(
    x,
    params,
    *,
    force_pallas=False,
    tb_max=TB_MAX,
    mxu_dtype=jnp.float32,  # pass jnp.bfloat16 on v5e (no native f32 MXU path)
):
    """Flatten -> Dropout(0.5) [identity in eval] -> Linear(42, 7). Returns (B, 7)."""
    w, b = params
    B = x.shape[0]
    x_flat = x.reshape(B, -1).astype(jnp.float32)  # nn.Flatten()
    assert x_flat.shape[1] == IN_FEATURES, (
        f"expected {IN_FEATURES} flattened features, got {x_flat.shape[1]}"
    )

    # Small-B fast path: custom-call overhead dominates; let XLA fuse it.
    if B < SMALL_B_THRESHOLD and not force_pallas:
        return x_flat @ w + b

    # Batch tile: multiple of 8 (sublane), capped so the Pallas path always
    # runs a multi-step grid for large B (>= 4 steps when B >= 4096), keeping
    # both v7x TensorCores busy via the "parallel" grid axis.
    tb = min(tb_max, _round_up(B, 8))
    grid = (pl.cdiv(B, tb),)

    cost = pl.CostEstimate(
        flops=2 * B * IN_FEATURES * OUT_FEATURES,
        transcendentals=0,
        bytes_accessed=4 * B * (IN_FEATURES + OUT_FEATURES)
        + 4 * (IN_FEATURES * OUT_FEATURES + OUT_FEATURES),
    )

    kernel = functools.partial(_linear_kernel, mxu_dtype=mxu_dtype)

    return pl.pallas_call(
        kernel,
        out_shape=jax.ShapeDtypeStruct((B, OUT_FEATURES), jnp.float32),
        grid=grid,
        in_specs=[
            # x: batch-tiled, auto double-buffered across grid steps.
            pl.BlockSpec((tb, IN_FEATURES), lambda i: (i, 0)),
            # W, b: full-array blocks, constant index_map -> VMEM-resident.
            pl.BlockSpec((IN_FEATURES, OUT_FEATURES), lambda i: (0, 0)),
            pl.BlockSpec((1, OUT_FEATURES), lambda i: (0, 0)),
        ],
        out_specs=pl.BlockSpec((tb, OUT_FEATURES), lambda i: (i, 0)),
        compiler_params=pltpu.CompilerParams(
            # Batch tiles are independent -> shard over v7x's 2 TensorCores.
            dimension_semantics=("parallel",),
        ),
        cost_estimate=cost,
    )(x_flat, w, b)


def init_params(key):
    """Deterministic init matching PyTorch Linear shapes (weight stored transposed)."""
    # TODO(synk): PyTorch's default Linear init is kaiming-uniform(a=sqrt(5)); this
    # simple uniform(+/- 1/sqrt(fan_in)) is only for self-contained testing.
    kw, kb = jax.random.split(key)
    bound = 1.0 / jnp.sqrt(jnp.float32(IN_FEATURES))
    w = jax.random.uniform(kw, (IN_FEATURES, OUT_FEATURES), jnp.float32, -bound, bound)
    b = jax.random.uniform(kb, (1, OUT_FEATURES), jnp.float32, -bound, bound)
    return (w, b)


if __name__ == "__main__":
    key = jax.random.PRNGKey(0)
    k_params, k_x, k_x2 = jax.random.split(key, 3)

    params = init_params(k_params)
    w, b = params

    # Small input consistent with the module: (B, 6, 7) flattens to (B, 42).
    x_small = jax.random.normal(k_x, (8, 6, 7), dtype=jnp.float32)
    ref_small = x_small.reshape(8, -1) @ w + b

    # 1) Default wrapper path (small B -> XLA fast path).
    out_fast = jax.block_until_ready(neural_network_forward(x_small, params))
    assert out_fast.shape == (8, OUT_FEATURES)
    assert jnp.allclose(out_fast, ref_small, atol=1e-5, rtol=1e-5)

    # 2) Pallas path, single-tile grid (grid=(1,)).
    out_p1 = jax.block_until_ready(
        neural_network_forward(x_small, params, force_pallas=True)
    )
    assert out_p1.shape == (8, OUT_FEATURES)
    assert jnp.allclose(out_p1, ref_small, atol=1e-5, rtol=1e-5)

    # 3) Pallas path, multi-step grid: B=64, tb=16 -> grid=(4,).  Exercises the
    #    double-buffered x/out pipeline and the "parallel" batch axis at a
    #    still-small shape.
    x_multi = jax.random.normal(k_x2, (64, 6, 7), dtype=jnp.float32)
    ref_multi = x_multi.reshape(64, -1) @ w + b
    out_p2 = jax.block_until_ready(
        neural_network_forward(x_multi, params, force_pallas=True, tb_max=16)
    )
    assert out_p2.shape == (64, OUT_FEATURES)
    assert jnp.allclose(out_p2, ref_multi, atol=1e-5, rtol=1e-5)

    print("KERNEL_OK")
</pallas_src>

<mosaic_0001>
module attributes {stable_mosaic.version = 11 : i64} {
  func.func @_linear_kernel(%arg0: i32, %arg1: memref<8x42xf32, #tpu.memory_space<vmem>>, %arg2: memref<42x7xf32, #tpu.memory_space<vmem>>, %arg3: memref<1x7xf32, #tpu.memory_space<vmem>>, %arg4: memref<8x7xf32, #tpu.memory_space<vmem>>) attributes {dimension_semantics = [#tpu.dimension_semantics<parallel>], iteration_bounds = array<i64: 1>, scalar_prefetch = 0 : i64, scratch_operands = 0 : i64, tpu.core_type = #tpu.core_type<tc>, window_params = [{transform_indices = @transform_0, window_bounds = array<i64: 8, 42>}, {pipeline_mode = #tpu.pipeline_mode<synchronous>, transform_indices = @transform_1, window_bounds = array<i64: 42, 7>}, {pipeline_mode = #tpu.pipeline_mode<synchronous>, transform_indices = @transform_2, window_bounds = array<i64: 1, 7>}, {transform_indices = @transform_3, window_bounds = array<i64: 8, 7>}]} {
    %c0 = arith.constant 0 : index
    %c0_0 = arith.constant 0 : index
    %0 = vector.load %arg1[%c0, %c0_0] : memref<8x42xf32, #tpu.memory_space<vmem>>, vector<8x42xf32>
    %c0_1 = arith.constant 0 : index
    %c0_2 = arith.constant 0 : index
    %1 = vector.load %arg2[%c0_1, %c0_2] : memref<42x7xf32, #tpu.memory_space<vmem>>, vector<42x7xf32>
    %cst = arith.constant dense<0.000000e+00> : vector<8x7xf32>
    %2 = tpu.matmul %0, %1, %cst {dimension_numbers = #tpu.dot_dimension_numbers<[1], [0], [0], [1], [0, 0, 1, 1], [], []>} : vector<8x42xf32>, vector<42x7xf32>, vector<8x7xf32> -> vector<8x7xf32>
    %c0_3 = arith.constant 0 : index
    %c0_4 = arith.constant 0 : index
    %3 = vector.load %arg3[%c0_3, %c0_4] : memref<1x7xf32, #tpu.memory_space<vmem>>, vector<1x7xf32>
    %4 = vector.broadcast %3 : vector<1x7xf32> to vector<8x7xf32>
    %5 = arith.addf %2, %4 : vector<8x7xf32>
    %c0_5 = arith.constant 0 : index
    %c0_6 = arith.constant 0 : index
    %6 = vector.load %arg4[%c0_5, %c0_6] : memref<8x7xf32, #tpu.memory_space<vmem>>, vector<8x7xf32>
    tpu.vector_store %arg4[%c0_5, %c0_6], %5 {strides = array<i32>} : memref<8x7xf32, #tpu.memory_space<vmem>>, vector<8x7xf32>,
    return
  }
  func.func @transform_0(%arg0: i32) -> (i32, i32) {
    %c0_i32 = arith.constant 0 : i32
    %c0_i32_0 = arith.constant 0 : i32
    return %arg0, %c0_i32 : i32, i32
  }
  func.func @transform_1(%arg0: i32) -> (i32, i32) {
    %c0_i32 = arith.constant 0 : i32
    %c0_i32_0 = arith.constant 0 : i32
    %c0_i32_1 = arith.constant 0 : i32
    return %c0_i32, %c0_i32_0 : i32, i32
  }
  func.func @transform_2(%arg0: i32) -> (i32, i32) {
    %c0_i32 = arith.constant 0 : i32
    %c0_i32_0 = arith.constant 0 : i32
    %c0_i32_1 = arith.constant 0 : i32
    return %c0_i32, %c0_i32_0 : i32, i32
  }
  func.func @transform_3(%arg0: i32) -> (i32, i32) {
    %c0_i32 = arith.constant 0 : i32
    %c0_i32_0 = arith.constant 0 : i32
    return %arg0, %c0_i32 : i32, i32
  }
}

</mosaic_0001>

<llo_original>
// kernel: tpu_custom_call.1
$region0: #{tpu_custom_call.1}
  #allocation0 [shape = 'u32[]', space=smem, size = 0x4, offset = 0x4, fixed_abs, tag = 'smem constant byte address 0x4 - core index']
  #allocation1 [shape = 'u32[144,128]{1,0:T(1,128)}', space=vmem, size = 0x12000, scoped, tag = 'internal scratch']
  %s0 = inlined_call_operand.vmem [shape: f32[8,42], index: 0, kind: input, shape index: {}]
  %s1 = inlined_call_operand.vmem [shape: f32[42,7], index: 1, kind: input, shape index: {}]
  %s2 = inlined_call_operand.vmem [shape: f32[1,7], index: 2, kind: input, shape index: {}]
  %s3 = inlined_call_operand.hbm [shape: f32[8,7], index: 3, kind: output, shape index: {}]
  %s4 = sld [smem:[#allocation0]]
  $region22: #{tpu_custom_call.1} parent=0
    _
  %s6 = ssub.s32 1, %s4
  %s7 = scalar_select 0, %s6, %s4
  $region1: #{tpu_custom_call.1} parent=0
    #allocation2 [shape = 'u8[4096]{0}', space=vmem, size = 0x1000, scoped, tag = 'output window, operand 0, single buffered']
    #allocation3 [shape = 's32[1]{0}', space=sflag, size = 0x4, scoped, tag = 'scoped memory for tpu_custom_call.1']
    %8 = vsyncpa [#allocation3], 0
    // Predicated region
    $region2: #{tpu_custom_call.1} parent=1 // pred_check
      _
    $region3: #{tpu_custom_call.1} parent=1 // pred_check_branch
      %10 = sbr.rel (0) target = $region5
    $region4: #{tpu_custom_call.1} parent=1 // pred_region
      _
    $region5: #{tpu_custom_call.1} parent=1 // pred_fallthru
      _
    // Predicated region
    $region6: #{tpu_custom_call.1} parent=1 // pred_check
      _
    $region7: #{tpu_custom_call.1} parent=1 // pred_check_branch
      %12 = sbr.rel (0) target = $region9
    $region8: #{tpu_custom_call.1} parent=1 // pred_region
      _
    $region9: #{tpu_custom_call.1} parent=1 // pred_fallthru
      _
    // Predicated region
    $region10: #{tpu_custom_call.1} parent=1 // pred_check
      _
    $region11: #{tpu_custom_call.1} parent=1 // pred_check_branch
      %14 = sbr.rel (0) target = $region13
    $region12: #{tpu_custom_call.1} parent=1 // pred_region
      _
    $region13: #{tpu_custom_call.1} parent=1 // pred_fallthru
      _
    %v15 = vld [vmem:[%s0] sm:$0xff]
    %v16 = vld [vmem:[%s1] sm:$0xff]
    %v17 = vld [vmem:[%s1 + $0x8] sm:$0xff]
    %v18 = vld [vmem:[%s1 + $0x10] sm:$0xff]
    %v19 = vld [vmem:[%s1 + $0x18] sm:$0xff]
    %v20 = vld [vmem:[%s1 + $0x20] sm:$0xff]
    %v21 = vld [vmem:[%s1 + $0x28] sm:$0x3]
    %v22 = vld [vmem:[%s2] sm:$0x1]
    %v24 = vlaneseq
    %v25 = vshrl.u32 %v24, 7
    %v26 = vsub.s32 0, %v25
    %v27 = vrot.slane %v22, %v26
    %vm29 = vcmask 343040
    %v31 = vsel %vm29, %v15, 0
    %vm33 = vcmask 1041408
    %v35 = vsel %vm33, %v21, 0
    %37 = vmatprep.subr.mxu0 0.0
    %38 = vmatpush1.msra.mxu0 0.0
    %39 = vmatprep.subr.mxu0 0.0
    %40 = vmatpush1.msra.mxu0 0.0
    %41 = vmatprep.subr.mxu0 0.0
    %42 = vmatpush1.msra.mxu0 0.0
    %43 = vmatprep.subr.mxu0 0.0
    %44 = vmatpush1.msra.mxu0 0.0
    %45 = vmatprep.subr.mxu0 0.0
    %46 = vmatpush1.msra.mxu0 0.0
    %47 = vmatprep.subr.mxu0 0.0
    %48 = vmatpush1.msra.mxu0 0.0
    %49 = vmatprep.subr.mxu0 0.0
    %50 = vmatpush1.msra.mxu0 0.0
    %51 = vmatprep.subr.mxu0 0.0
    %52 = vmatpush1.msra.mxu0 0.0
    %53 = vmatprep.subr.mxu0 0.0
    %54 = vmatpush1.msra.mxu0 0.0
    %55 = vmatprep.subr.mxu0 0.0
    %56 = vmatpush1.msra.mxu0 0.0
    %57 = vmatprep.subr.mxu0 0.0
    %58 = vmatpush1.msra.mxu0 %v35
    %59 = vmatprep.subr.mxu0 0.0
    %60 = vmatpush1.msra.mxu0 %v20
    %61 = vmatprep.subr.mxu0 0.0
    %62 = vmatpush1.msra.mxu0 %v19
    %63 = vmatprep.subr.mxu0 0.0
    %64 = vmatpush1.msra.mxu0 %v18
    %65 = vmatprep.subr.mxu0 0.0
    %66 = vmatpush1.msra.mxu0 %v17
    %67 = vmatprep.subr.mxu0 0.0
    %68 = vmatpush1.msra.mxu0 %v16
    %69 = vmatprep.subr.mxu0 0.0
    %70 = vmatpush2.msra.mxu0 0.0
    %71 = vmatprep.subr.mxu0 0.0
    %72 = vmatpush2.msra.mxu0 0.0
    %73 = vmatprep.subr.mxu0 0.0
    %74 = vmatpush2.msra.mxu0 0.0
    %75 = vmatprep.subr.mxu0 0.0
    %76 = vmatpush2.msra.mxu0 0.0
    %77 = vmatprep.subr.mxu0 0.0
    %78 = vmatpush2.msra.mxu0 0.0
    %79 = vmatprep.subr.mxu0 0.0
    %80 = vmatpush2.msra.mxu0 0.0
    %81 = vmatprep.subr.mxu0 0.0
    %82 = vmatpush2.msra.mxu0 0.0
    %83 = vmatprep.subr.mxu0 0.0
    %84 = vmatpush2.msra.mxu0 0.0
    %85 = vmatprep.subr.mxu0 0.0
    %86 = vmatpush2.msra.mxu0 0.0
    %87 = vmatprep.subr.mxu0 0.0
    %88 = vmatpush2.msra.mxu0 0.0
    %89 = vmatprep.subr.mxu0 0.0
    %90 = vmatpush2.msra.mxu0 0.0
    %91 = vmatprep.subr.mxu0 0.0
    %92 = vmatpush2.msra.mxu0 0.0
    %93 = vmatprep.subr.mxu0 0.0
    %94 = vmatpush2.msra.mxu0 0.0
    %95 = vmatprep.subr.mxu0 0.0
    %96 = vmatpush2.msra.mxu0 0.0
    %97 = vmatprep.subr.mxu0 0.0
    %98 = vmatpush2.msra.mxu0 0.0
    %99 = vmatprep.subr.mxu0 0.0
    %100 = vmatpush2.msra.mxu0 0.0
    %101 = vmatprep.mubr.f32.mxu0 0.0
    %102 = vmatmul.mubr.f32.gmra.mxu0 %v31
    %v103 = vpop.f32.mrf.mxu0
    %v104 = vadd.f32 %v27, %v103
    %v105 = vpop.f32.mrf.mxu0
    %106 = vdwg.mxu0
    %vm107 = vcmask 56320
    %108 = vst.msk [vmem:[#allocation2] sm:$0xff] %vm107, %v104
    // Predicated region
    $region14: #{tpu_custom_call.1} parent=1 // pred_check
      _
    $region15: #{tpu_custom_call.1} parent=1 // pred_check_branch
      %110 = sbr.rel (0) target = $region17
    $region16: #{tpu_custom_call.1} parent=1 // pred_region
      %s112 = ssub.s32 128, 128
      %113 = vsyncadd [#allocation3], %s112
      %s115 = sshll.u32 [#allocation2], 4
      %s116 = int_to_ptr.vmem [resolvable:$true] %s115
      %118 = dma.vmem_to_hbm [thread:$0]  %s116, 128, %s3, [#allocation3]
    $region17: #{tpu_custom_call.1} parent=1 // pred_fallthru
      _
    // Predicated region
    $region18: #{tpu_custom_call.1} parent=1 // pred_check
      _
    $region19: #{tpu_custom_call.1} parent=1 // pred_check_branch
      %120 = sbr.rel (0) target = $region21
    $region20: #{tpu_custom_call.1} parent=1 // pred_region
      %121 = dma.done [#allocation3], 128
    $region21: #{tpu_custom_call.1} parent=1 // pred_fallthru
      _
    %122 = vsyncpa [#allocation3], 1

</llo_original>
